<compile_context>
chip_gen: v5e
topology: v5e:2x2
jax: 0.10.0
libtpu: 0.0.40
codegen_flags: <defaults>
</compile_context>

<pallas_src>
import math

import jax
import jax.numpy as jnp
from jax.experimental import pallas as pl
from jax.experimental.pallas import tpu as pltpu

_LANES = 128
_SUBLANES = 8

# Per-input block target bytes by TPU generation (per perf review):
#   v5e: 2 MiB (double-buffered in+out ~8 MiB, safely inside 16 MiB default)
#   v6e: 4 MiB (already in the flat >=85%-of-roofline region)
#   v7x: 8 MiB (amortizes ~0.35 us/step against 3.2 TB/s HBM)
_BLOCK_BYTES_BY_GEN = {5: 2 << 20, 6: 4 << 20, 7: 8 << 20}
_BLOCK_BYTES_DEFAULT = 2 << 20  # conservative: safe on every generation


def _tpu_generation():
    """Best-effort TPU generation (5/6/7) from device_kind; None if unknown."""
    try:
        kind = jax.devices()[0].device_kind.lower()
    except Exception:  # pragma: no cover - CPU/interpret fallbacks
        return None
    for gen in (7, 6, 5):
        if f"v{gen}" in kind or f"tpu{gen}" in kind:
            return gen
    return None


def _cmvn_kernel(feat_ref, stats_ref, out_ref):
    # feat_ref / out_ref: (TR, C) tile.  stats_ref: (2, C) fp32 resident tile
    # (row 0 = mean, row 1 = istd); (1, C) slices broadcast over sublanes.
    feat = feat_ref[...].astype(jnp.float32)
    mean = stats_ref[0:1, :]
    istd = stats_ref[1:2, :]
    out_ref[...] = ((feat - mean) * istd).astype(out_ref.dtype)


def _cmvn_2d(x, stats, *, generation):
    """(x - mean) * istd over a 2-D slab x:(R, C), stats:(2, C) fp32."""
    R, C = x.shape
    dtype = x.dtype
    itemsize = jnp.dtype(dtype).itemsize
    # Native sublane multiple for the dtype (8 for f32, 16 for bf16, ...).
    sub = max(_SUBLANES, 32 // max(itemsize, 1))

    target = _BLOCK_BYTES_BY_GEN.get(generation, _BLOCK_BYTES_DEFAULT)
    tr = max(sub, (target // (C * itemsize)) // sub * sub)
    if generation == 7 and R >= 2 * sub:
        # v7x has 2 TensorCores: keep >=2 grid steps so the "parallel" axis
        # actually shards work across both cores.
        half = ((R + 1) // 2 + sub - 1) // sub * sub
        tr = min(tr, half)
    tr = min(tr, R)  # full-dim block when the array is small
    grid = (pl.cdiv(R, tr),)

    # Explicit scoped-VMEM budget from the actual tile math (double-buffered
    # input + output, resident stats, generous internal-scratch headroom).
    block_bytes = tr * C * itemsize
    stats_bytes = 2 * C * 4
    vmem_limit = 2 * 2 * block_bytes + 2 * stats_bytes + (4 << 20)
    vmem_limit = int(max(vmem_limit, 16 << 20))

    return pl.pallas_call(
        _cmvn_kernel,
        out_shape=jax.ShapeDtypeStruct((R, C), dtype),
        grid=grid,
        in_specs=[
            pl.BlockSpec((tr, C), lambda r: (r, 0)),
            # Constant-index stats stay resident across grid steps (tiny).
            pl.BlockSpec((2, C), lambda r: (0, 0)),
        ],
        out_specs=pl.BlockSpec((tr, C), lambda r: (r, 0)),
        compiler_params=pltpu.CompilerParams(
            dimension_semantics=("parallel",),
            vmem_limit_bytes=vmem_limit,
        ),
    )(x, stats)


def prepare_cmvn_stats(global_mean, global_istd):
    """Precompute the lane-tiled fp32 (2, k*D) stats once (cache at init)."""
    mean = jnp.asarray(global_mean, jnp.float32)
    istd = jnp.asarray(global_istd, jnp.float32)
    D = mean.shape[-1]
    k = _LANES // math.gcd(D, _LANES)
    return jnp.stack([jnp.tile(mean, k), jnp.tile(istd, k)], axis=0)


def global_cmvn(feat, stats):
    """Pallas GlobalCmvnLayer.forward for non-'pcm' feats.

    feat: (B, T, D); stats: (2, k*D) fp32 from prepare_cmvn_stats.
    """
    B, T, D = feat.shape
    cols = stats.shape[1]
    k = cols // D
    rows = B * T
    gen = _tpu_generation()

    flat = feat.reshape(rows, D)
    if rows % k == 0:
        # Fast path: pure reshape to a lane-dense (rows/k, k*D) slab.
        folded = flat.reshape(rows // k, cols)
        out = _cmvn_2d(folded, stats, generation=gen)
        return out.reshape(B, T, D)

    # Ragged row count: run directly on the unfolded (rows, D) view.  Still
    # exactly one HBM read + one HBM write (no pad / slice / concat copies);
    # the in-core lane underfill is hidden behind the DMA.
    out = _cmvn_2d(flat, stats[:, :D], generation=gen)
    return out.reshape(B, T, D)


def global_cmvn_layer(feat, global_mean=None, global_istd=None):
    """Functional one-off mirror of GlobalCmvnLayer.forward."""
    if global_mean is None or global_istd is None:
        return feat  # 'pcm' path: identity
    return global_cmvn(feat, prepare_cmvn_stats(global_mean, global_istd))


class GlobalCmvnLayer:
    """JAX/Pallas mirror of the PyTorch GlobalCmvnLayer (stats cached at init)."""

    def __init__(self, config, global_mean=None, global_istd=None):
        if config["feat_type"] != "pcm":
            assert "num_mel_bins" in config["feat_config"]
            self._feat_dim = config["feat_config"]["num_mel_bins"]
            if global_mean is None:
                global_mean = jnp.zeros((self._feat_dim,), jnp.float32)
            if global_istd is None:
                global_istd = jnp.ones((self._feat_dim,), jnp.float32)
            # Built once, reused every call (no per-call tile/stack ops).
            self._stats = prepare_cmvn_stats(global_mean, global_istd)
        else:
            self._feat_dim = None
            self._stats = None

    def __call__(self, feat):
        if self._stats is None:
            return feat
        return global_cmvn(feat, self._stats)


if __name__ == "__main__":
    key = jax.random.PRNGKey(0)
    k_feat, k_mean, k_istd = jax.random.split(key, 3)

    # --- Config equivalent: feat_type != 'pcm', num_mel_bins = 32 ------------
    B, T, D = 2, 8, 32
    feat = jax.random.normal(k_feat, (B, T, D), dtype=jnp.float32)
    global_mean = jax.random.normal(k_mean, (D,), dtype=jnp.float32)
    global_istd = jax.random.uniform(
        k_istd, (D,), dtype=jnp.float32, minval=0.5, maxval=1.5
    )
    layer = GlobalCmvnLayer(
        {"feat_type": "fbank", "feat_config": {"num_mel_bins": D}},
        global_mean=global_mean,
        global_istd=global_istd,
    )
    out = jax.block_until_ready(layer(feat))
    ref = (feat - global_mean[None, None, :]) * global_istd[None, None, :]
    assert out.shape == feat.shape and out.dtype == feat.dtype
    assert jnp.allclose(out, ref, atol=1e-6, rtol=1e-6)

    # --- Ragged row count (B*T % k != 0): unfolded single-pass path ----------
    B2, T2, D2 = 3, 7, 80
    feat2 = jax.random.normal(k_feat, (B2, T2, D2), dtype=jnp.float32)
    mean2 = jax.random.normal(k_mean, (D2,), dtype=jnp.float32)
    istd2 = jax.random.uniform(
        k_istd, (D2,), dtype=jnp.float32, minval=0.5, maxval=1.5
    )
    out2 = jax.block_until_ready(global_cmvn_layer(feat2, mean2, istd2))
    ref2 = (feat2 - mean2[None, None, :]) * istd2[None, None, :]
    assert jnp.allclose(out2, ref2, atol=1e-6, rtol=1e-6)

    # --- bf16 I/O path (fp32 math inside the kernel, single final rounding) --
    feat_bf = feat.astype(jnp.bfloat16)
    out_bf = jax.block_until_ready(layer(feat_bf))
    ref_bf = ((feat_bf.astype(jnp.float32) - global_mean) * global_istd).astype(
        jnp.bfloat16
    )
    assert out_bf.dtype == jnp.bfloat16
    assert jnp.allclose(
        out_bf.astype(jnp.float32), ref_bf.astype(jnp.float32), atol=1e-2, rtol=1e-2
    )

    # --- 'pcm' (identity) path ------------------------------------------------
    pcm_layer = GlobalCmvnLayer({"feat_type": "pcm"})
    out_pcm = jax.block_until_ready(pcm_layer(feat))
    assert jnp.array_equal(out_pcm, feat)

    print("KERNEL_OK")
</pallas_src>

<mosaic_0001>
module attributes {stable_mosaic.version = 11 : i64} {
  func.func @_cmvn_kernel(%arg0: i32, %arg1: memref<4x128xf32, #tpu.memory_space<vmem>>, %arg2: memref<2x128xf32, #tpu.memory_space<vmem>>, %arg3: memref<4x128xf32, #tpu.memory_space<vmem>>) attributes {dimension_semantics = [#tpu.dimension_semantics<parallel>], iteration_bounds = array<i64: 1>, scalar_prefetch = 0 : i64, scratch_operands = 0 : i64, tpu.core_type = #tpu.core_type<tc>, window_params = [{transform_indices = @transform_0, window_bounds = array<i64: 4, 128>}, {pipeline_mode = #tpu.pipeline_mode<synchronous>, transform_indices = @transform_1, window_bounds = array<i64: 2, 128>}, {transform_indices = @transform_2, window_bounds = array<i64: 4, 128>}]} {
    %c0 = arith.constant 0 : index
    %c0_0 = arith.constant 0 : index
    %0 = vector.load %arg1[%c0, %c0_0] : memref<4x128xf32, #tpu.memory_space<vmem>>, vector<4x128xf32>
    %c0_1 = arith.constant 0 : index
    %c0_2 = arith.constant 0 : index
    %1 = vector.load %arg2[%c0_1, %c0_2] : memref<2x128xf32, #tpu.memory_space<vmem>>, vector<1x128xf32>
    %c1 = arith.constant 1 : index
    %c0_3 = arith.constant 0 : index
    %2 = vector.load %arg2[%c1, %c0_3] : memref<2x128xf32, #tpu.memory_space<vmem>>, vector<1x128xf32>
    %3 = vector.broadcast %1 : vector<1x128xf32> to vector<4x128xf32>
    %4 = arith.subf %0, %3 : vector<4x128xf32>
    %5 = vector.broadcast %2 : vector<1x128xf32> to vector<4x128xf32>
    %6 = arith.mulf %4, %5 : vector<4x128xf32>
    %c0_4 = arith.constant 0 : index
    %c0_5 = arith.constant 0 : index
    %7 = vector.load %arg3[%c0_4, %c0_5] : memref<4x128xf32, #tpu.memory_space<vmem>>, vector<4x128xf32>
    tpu.vector_store %arg3[%c0_4, %c0_5], %6 {strides = array<i32>} : memref<4x128xf32, #tpu.memory_space<vmem>>, vector<4x128xf32>,
    return
  }
  func.func @transform_0(%arg0: i32) -> (i32, i32) {
    %c0_i32 = arith.constant 0 : i32
    %c0_i32_0 = arith.constant 0 : i32
    return %arg0, %c0_i32 : i32, i32
  }
  func.func @transform_1(%arg0: i32) -> (i32, i32) {
    %c0_i32 = arith.constant 0 : i32
    %c0_i32_0 = arith.constant 0 : i32
    %c0_i32_1 = arith.constant 0 : i32
    return %c0_i32, %c0_i32_0 : i32, i32
  }
  func.func @transform_2(%arg0: i32) -> (i32, i32) {
    %c0_i32 = arith.constant 0 : i32
    %c0_i32_0 = arith.constant 0 : i32
    return %arg0, %c0_i32 : i32, i32
  }
}

</mosaic_0001>

<llo_original>
// kernel: tpu_custom_call.1
$region0: #{tpu_custom_call.1}
  #allocation0 [shape = 'u32[]', space=smem, size = 0x4, offset = 0x4, fixed_abs, tag = 'smem constant byte address 0x4 - core index']
  #allocation1 [shape = 'u32[72,128]{1,0:T(1,128)}', space=vmem, size = 0x9000, scoped, tag = 'internal scratch']
  %s0 = inlined_call_operand.hbm [shape: f32[4,128], index: 0, kind: input, shape index: {}]
  %s1 = inlined_call_operand.hbm [shape: f32[2,128], index: 1, kind: input, shape index: {}]
  %s2 = inlined_call_operand.hbm [shape: f32[4,128], index: 2, kind: output, shape index: {}]
  %s3 = sld [smem:[#allocation0]]
  $region26: #{tpu_custom_call.1} parent=0
    _
  %s5 = ssub.s32 1, %s3
  %s6 = scalar_select 0, %s5, %s3
  $region1: #{tpu_custom_call.1} parent=0
    #allocation2 [shape = 'u8[2048]{0}', space=vmem, size = 0x800, scoped, tag = 'input window, operand 0, single buffered']
    #allocation3 [shape = 's32[1]{0}', space=sflag, size = 0x4, scoped, tag = 'scoped memory for tpu_custom_call.1']
    #allocation4 [shape = 's32[1]{0}', space=sflag, size = 0x4, scoped, tag = 'scoped memory for tpu_custom_call.1']
    #allocation5 [shape = 'u8[1024]{0}', space=vmem, size = 0x400, scoped, tag = 'input window, operand 1, single buffered']
    #allocation6 [shape = 's32[1]{0}', space=sflag, size = 0x4, scoped, tag = 'scoped memory for tpu_custom_call.1']
    #allocation7 [shape = 'u8[2048]{0}', space=vmem, size = 0x800, scoped, tag = 'output window, operand 0, single buffered']
    %7 = vsyncpa [#allocation3], 0
    %8 = vsyncpa [#allocation6], 0
    %9 = vsyncpa [#allocation4], 0
    // Predicated region
    $region2: #{tpu_custom_call.1} parent=1 // pred_check
      _
    $region3: #{tpu_custom_call.1} parent=1 // pred_check_branch
      %11 = sbr.rel (0) target = $region5
    $region4: #{tpu_custom_call.1} parent=1 // pred_region
      %13 = vsyncadd [#allocation3], 0
      %s15 = sshll.u32 %s0, 4
      %s16 = int_to_ptr.hbm [resolvable:$true] %s15
      %s17 = sshll.u32 [#allocation2], 4
      %s18 = int_to_ptr.vmem [resolvable:$true] %s17
      %20 = dma.hbm_to_vmem [thread:$0]  %s16, 64, %s18, [#allocation3]
    $region5: #{tpu_custom_call.1} parent=1 // pred_fallthru
      _
    // Predicated region
    $region6: #{tpu_custom_call.1} parent=1 // pred_check
      _
    $region7: #{tpu_custom_call.1} parent=1 // pred_check_branch
      %22 = sbr.rel (0) target = $region9
    $region8: #{tpu_custom_call.1} parent=1 // pred_region
      %24 = vsyncadd [#allocation6], 0
      %s26 = sshll.u32 %s1, 4
      %s27 = int_to_ptr.hbm [resolvable:$true] %s26
      %s28 = sshll.u32 [#allocation5], 4
      %s29 = int_to_ptr.vmem [resolvable:$true] %s28
      %31 = dma.hbm_to_vmem [thread:$0]  %s27, 32, %s29, [#allocation6]
    $region9: #{tpu_custom_call.1} parent=1 // pred_fallthru
      _
    // Predicated region
    $region10: #{tpu_custom_call.1} parent=1 // pred_check
      _
    $region11: #{tpu_custom_call.1} parent=1 // pred_check_branch
      %33 = sbr.rel (0) target = $region13
    $region12: #{tpu_custom_call.1} parent=1 // pred_region
      %35 = dma.done [#allocation3], 64
    $region13: #{tpu_custom_call.1} parent=1 // pred_fallthru
      _
    // Predicated region
    $region14: #{tpu_custom_call.1} parent=1 // pred_check
      _
    $region15: #{tpu_custom_call.1} parent=1 // pred_check_branch
      %37 = sbr.rel (0) target = $region17
    $region16: #{tpu_custom_call.1} parent=1 // pred_region
      %39 = dma.done [#allocation6], 32
    $region17: #{tpu_custom_call.1} parent=1 // pred_fallthru
      _
    %v40 = vld [vmem:[#allocation2] sm:$0xf]
    %v41 = vld [vmem:[#allocation5] sm:$0x1]
    %v42 = vld [vmem:[#allocation5 + $0x1] sm:$0x1]
    %v43 = vperm.slane %v41, 0
    %v44 = vsub.f32 %v40, %v43
    %v45 = vperm.slane %v42, 0
    %v46 = vmul.f32 %v44, %v45
    %47 = vst [vmem:[#allocation7] sm:$0xf] %v46
    // Predicated region
    $region18: #{tpu_custom_call.1} parent=1 // pred_check
      _
    $region19: #{tpu_custom_call.1} parent=1 // pred_check_branch
      %49 = sbr.rel (0) target = $region21
    $region20: #{tpu_custom_call.1} parent=1 // pred_region
      %51 = vsyncadd [#allocation4], 0
      %s53 = sshll.u32 [#allocation7], 4
      %s54 = int_to_ptr.vmem [resolvable:$true] %s53
      %s55 = sshll.u32 %s2, 4
      %s56 = int_to_ptr.hbm [resolvable:$true] %s55
      %58 = dma.vmem_to_hbm [thread:$0]  %s54, 64, %s56, [#allocation4]
    $region21: #{tpu_custom_call.1} parent=1 // pred_fallthru
      _
    // Predicated region
    $region22: #{tpu_custom_call.1} parent=1 // pred_check
      _
    $region23: #{tpu_custom_call.1} parent=1 // pred_check_branch
      %60 = sbr.rel (0) target = $region25
    $region24: #{tpu_custom_call.1} parent=1 // pred_region
      %62 = dma.done [#allocation4], 64
    $region25: #{tpu_custom_call.1} parent=1 // pred_fallthru
      _
    %63 = vsyncpa [#allocation3], 1
    %64 = vsyncpa [#allocation6], 1
    %65 = vsyncpa [#allocation4], 1

</llo_original>
